<compile_context>
chip_gen: v5e
topology: v5e:2x2
jax: 0.10.0
libtpu: 0.0.40
codegen_flags: <defaults>
</compile_context>

<pallas_src>
import jax
import jax.numpy as jnp
from jax.experimental import pallas as pl
from jax.experimental.pallas import tpu as pltpu


# ------------------------------------------------------------------ helpers

def _round_up(x, m):
    return ((x + m - 1) // m) * m


def _pad_axis(x, axis, new_size, value=0.0):
    if x.shape[axis] == new_size:
        return x
    pad = [(0, 0)] * x.ndim
    pad[axis] = (0, new_size - x.shape[axis])
    return jnp.pad(x, pad, constant_values=value)


def _avg_tile_bytes(bb, bs, hidden, n_inputs, itemsize):
    """Honest per-step VMEM footprint of the masked-average kernel."""
    h_pad = _round_up(hidden, 128)
    hidden_in = 2 * n_inputs * bb * bs * hidden * itemsize   # double-buffered inputs
    mask_in = 2 * bb * bs * 128 * 4                          # (bb,bs,1) lane-pads 1->128
    temps = 2 * bb * bs * h_pad * 4                          # f32 cast + product temp
    small = 2 * bb * h_pad * itemsize + bb * h_pad * 4 + bb * 128 * 4  # out + scratch
    return hidden_in + mask_in + temps + small


def _choose_avg_tiling(batch, seq, hidden, n_inputs, itemsize,
                       budget_bytes=10 * 1024 * 1024):
    """Pick (block_b, block_s). Prefer covering the whole sequence per step
    (one S step) with as many 8-row slabs as fit the budget; otherwise keep
    8 rows and tile the sequence axis in lane-aligned (multiple-of-128)
    blocks, relying on the in-kernel accumulator."""
    s8 = _round_up(max(seq, 1), 8)
    b_cap = min(256, _round_up(batch, 8))

    bb = 8
    while (bb * 2 <= b_cap
           and _avg_tile_bytes(bb * 2, s8, hidden, n_inputs, itemsize) <= budget_bytes):
        bb *= 2
    if _avg_tile_bytes(bb, s8, hidden, n_inputs, itemsize) <= budget_bytes:
        return bb, s8

    bb, bs = 8, 128
    while (bs * 2 <= s8
           and _avg_tile_bytes(bb, bs * 2, hidden, n_inputs, itemsize) <= budget_bytes):
        bs *= 2
    return bb, bs


# ------------------------------------------------------------------ kernels

def _cls_kernel(h_ref, o_ref):
    # h_ref: (TB, s_blk, H) -- only token 0 of the small aligned window is used.
    o_ref[...] = h_ref[:, 0:1, :].astype(o_ref.dtype)


def _masked_avg_kernel(*refs):
    # refs = (h_1, ..., h_k, mask, out, num_acc, den_acc); k in {1, 2}.
    *h_refs, m_ref, o_ref, num_acc, den_acc = refs
    k = pl.program_id(1)

    @pl.when(k == 0)
    def _():
        num_acc[...] = jnp.zeros_like(num_acc)
        den_acc[...] = jnp.zeros_like(den_acc)

    m = m_ref[...].astype(jnp.float32)                      # (TB, TS, 1)
    num = num_acc[...]
    for r in h_refs:                                        # 1 or 2 inputs, unrolled
        num = num + jnp.sum(r[...].astype(jnp.float32) * m, axis=1, keepdims=True)
    num_acc[...] = num
    den_acc[...] = den_acc[...] + jnp.sum(m, axis=1, keepdims=True)

    @pl.when(k == pl.num_programs(1) - 1)
    def _():
        # Fold the 1/len averaging factor into the reciprocal multiply.
        # Rows whose real mask is all-zero divide by zero, matching the
        # PyTorch reference; padded rows have mask==1 so never hit 0/0.
        inv = pl.reciprocal(den_acc[...]) * (1.0 / len(h_refs))
        o_ref[...] = (num_acc[...] * inv).astype(o_ref.dtype)


# ------------------------------------------------------------------ wrappers

def _cls_pool(last_hidden):
    B, S, H = last_hidden.shape
    block_b = min(128, _round_up(B, 8))
    padded_B = _round_up(B, block_b)
    h = _pad_axis(last_hidden, 0, padded_B)
    s_blk = min(8, S)   # aligned token-0 window; ~S/8 less HBM traffic than full S

    out = pl.pallas_call(
        _cls_kernel,
        out_shape=jax.ShapeDtypeStruct((padded_B, 1, H), last_hidden.dtype),
        grid_spec=pltpu.PrefetchScalarGridSpec(
            num_scalar_prefetch=0,
            grid=(padded_B // block_b,),
            in_specs=[pl.BlockSpec((block_b, s_blk, H), lambda i: (i, 0, 0))],
            out_specs=pl.BlockSpec((block_b, 1, H), lambda i: (i, 0, 0)),
        ),
        compiler_params=pltpu.CompilerParams(
            dimension_semantics=("parallel",)),
    )(h)
    return out[:B, 0, :]


def _masked_avg_pool(hiddens, attention_mask):
    B, S, H = hiddens[0].shape
    n = len(hiddens)
    itemsize = jnp.dtype(hiddens[0].dtype).itemsize
    block_b, block_s = _choose_avg_tiling(B, S, H, n, itemsize)
    padded_B = _round_up(B, block_b)
    padded_S = _round_up(S, block_s)

    hs = []
    for x in hiddens:
        x = _pad_axis(x, 1, padded_S, 0.0)
        x = _pad_axis(x, 0, padded_B, 0.0)
        hs.append(x)

    m = attention_mask.astype(jnp.float32)
    m = _pad_axis(m, 1, padded_S, 0.0)   # padded tokens must not count
    m = _pad_axis(m, 0, padded_B, 1.0)   # padded rows: den > 0, output discarded
    m = m.reshape(padded_B, padded_S, 1)

    in_specs = [pl.BlockSpec((block_b, block_s, H), lambda i, k: (i, k, 0))
                for _ in range(n)]
    in_specs.append(pl.BlockSpec((block_b, block_s, 1), lambda i, k: (i, k, 0)))

    est = _avg_tile_bytes(block_b, block_s, H, n, itemsize)
    vmem_limit = int(min(48 * 1024 * 1024, max(16 * 1024 * 1024, 2 * est)))

    out = pl.pallas_call(
        _masked_avg_kernel,
        out_shape=jax.ShapeDtypeStruct((padded_B, 1, H), hiddens[0].dtype),
        grid_spec=pltpu.PrefetchScalarGridSpec(
            num_scalar_prefetch=0,
            grid=(padded_B // block_b, padded_S // block_s),
            in_specs=in_specs,
            out_specs=pl.BlockSpec((block_b, 1, H), lambda i, k: (i, 0, 0)),
            scratch_shapes=[
                pltpu.VMEM((block_b, 1, H), jnp.float32),   # num accumulator
                pltpu.VMEM((block_b, 1, 1), jnp.float32),   # den accumulator
            ],
        ),
        compiler_params=pltpu.CompilerParams(
            dimension_semantics=("parallel", "arbitrary"),
            vmem_limit_bytes=vmem_limit),
    )(*hs, m)
    return out[:B, 0, :]


def pooler_forward(pooler_type, last_hidden_state, attention_mask,
                   hidden_states=None):
    """Pallas equivalent of Pooler.forward.

    last_hidden_state: (B, S, H)
    attention_mask:    (B, S)
    hidden_states:     sequence of (B, S, H) layers (needed for avg_first_last
                       / avg_top2), first element = embeddings, last = final.
    """
    assert pooler_type in ['cls', 'cls_before_pooler', 'avg', 'avg_top2',
                           'avg_first_last', 'first_token_transform'], \
        f'unrecognized pooling type {pooler_type}'

    if pooler_type in ('cls', 'cls_before_pooler', 'first_token_transform'):
        return _cls_pool(last_hidden_state)
    # TODO(synk): the original `elif self.pooling == 'pooler'` branch reads a
    # nonexistent attribute and outputs.pooler_output (an MLP head); it is
    # unreachable in the reference and not translated here.
    if pooler_type == 'avg':
        return _masked_avg_pool((last_hidden_state,), attention_mask)
    if pooler_type == 'avg_first_last':
        return _masked_avg_pool((hidden_states[0], hidden_states[-1]),
                                attention_mask)
    if pooler_type == 'avg_top2':
        return _masked_avg_pool((hidden_states[-2], hidden_states[-1]),
                                attention_mask)
    raise NotImplementedError


# ------------------------------------------------------------------ test

if __name__ == "__main__":
    key = jax.random.PRNGKey(0)
    B, S, H = 2, 8, 32
    n_layers = 4

    keys = jax.random.split(key, n_layers)
    hidden_states = [jax.random.normal(keys[i], (B, S, H), dtype=jnp.float32)
                     for i in range(n_layers)]
    last_hidden = hidden_states[-1]

    # Row 0: full sequence; row 1: 5 real tokens, 3 padding tokens.
    lengths = jnp.array([S, 5])
    attention_mask = (jnp.arange(S)[None, :] < lengths[:, None]).astype(jnp.float32)

    # Pure-JAX references mirroring the PyTorch module.
    mask3 = attention_mask[:, :, None]
    msum = attention_mask.sum(-1)[:, None]
    refs = {
        'cls': last_hidden[:, 0],
        'avg': (last_hidden * mask3).sum(1) / msum,
        'avg_first_last': ((hidden_states[0] + hidden_states[-1]) / 2.0 * mask3).sum(1) / msum,
        'avg_top2': ((hidden_states[-2] + hidden_states[-1]) / 2.0 * mask3).sum(1) / msum,
    }

    for ptype in ['cls', 'cls_before_pooler', 'first_token_transform',
                  'avg', 'avg_first_last', 'avg_top2']:
        out = pooler_forward(ptype, last_hidden, attention_mask,
                             hidden_states=hidden_states)
        out = jax.block_until_ready(out)
        ref_key = ptype if ptype in refs else 'cls'
        ref = refs[ref_key]
        assert out.shape == ref.shape, (ptype, out.shape, ref.shape)
        assert jnp.allclose(out, ref, atol=1e-5, rtol=1e-5), \
            (ptype, float(jnp.max(jnp.abs(out - ref))))

    print("KERNEL_OK")
</pallas_src>

<mosaic_0001>
module attributes {stable_mosaic.version = 11 : i64} {
  func.func @_cls_kernel(%arg0: i32, %arg1: memref<8x8x32xf32, #tpu.memory_space<vmem>>, %arg2: memref<8x1x32xf32, #tpu.memory_space<vmem>>) attributes {dimension_semantics = [#tpu.dimension_semantics<parallel>], iteration_bounds = array<i64: 1>, scalar_prefetch = 0 : i64, scratch_operands = 0 : i64, tpu.core_type = #tpu.core_type<tc>, window_params = [{transform_indices = @transform_0, window_bounds = array<i64: 8, 8, 32>}, {transform_indices = @transform_1, window_bounds = array<i64: 8, 1, 32>}]} {
    %c0 = arith.constant 0 : index
    %c0_0 = arith.constant 0 : index
    %c0_1 = arith.constant 0 : index
    %0 = vector.load %arg1[%c0, %c0_0, %c0_1] : memref<8x8x32xf32, #tpu.memory_space<vmem>>, vector<8x1x32xf32>
    %c0_2 = arith.constant 0 : index
    %c0_3 = arith.constant 0 : index
    %c0_4 = arith.constant 0 : index
    %1 = vector.load %arg2[%c0_2, %c0_3, %c0_4] : memref<8x1x32xf32, #tpu.memory_space<vmem>>, vector<8x1x32xf32>
    tpu.vector_store %arg2[%c0_2, %c0_3, %c0_4], %0 {strides = array<i32>} : memref<8x1x32xf32, #tpu.memory_space<vmem>>, vector<8x1x32xf32>,
    return
  }
  func.func @transform_0(%arg0: i32) -> (i32, i32, i32) {
    %c0_i32 = arith.constant 0 : i32
    %c0_i32_0 = arith.constant 0 : i32
    %c0_i32_1 = arith.constant 0 : i32
    return %arg0, %c0_i32, %c0_i32_0 : i32, i32, i32
  }
  func.func @transform_1(%arg0: i32) -> (i32, i32, i32) {
    %c0_i32 = arith.constant 0 : i32
    %c0_i32_0 = arith.constant 0 : i32
    %c0_i32_1 = arith.constant 0 : i32
    return %arg0, %c0_i32, %c0_i32_0 : i32, i32, i32
  }
}

</mosaic_0001>

<llo_original>
// kernel: tpu_custom_call.1
$region0: #{tpu_custom_call.1}
  #allocation0 [shape = 'u32[]', space=smem, size = 0x4, offset = 0x4, fixed_abs, tag = 'smem constant byte address 0x4 - core index']
  #allocation1 [shape = 'u32[72,128]{1,0:T(1,128)}', space=vmem, size = 0x9000, scoped, tag = 'internal scratch']
  %s0 = inlined_call_operand.hbm [shape: f32[8,8,32], index: 0, kind: input, shape index: {}]
  %s1 = inlined_call_operand.hbm [shape: f32[8,1,32], index: 1, kind: output, shape index: {}]
  %s2 = sld [smem:[#allocation0]]
  $region18: #{tpu_custom_call.1} parent=0
    _
  %s4 = ssub.s32 1, %s2
  %s5 = scalar_select 0, %s4, %s2
  $region1: #{tpu_custom_call.1} parent=0
    #allocation2 [shape = 'u8[32768]{0}', space=vmem, size = 0x8000, scoped, tag = 'input window, operand 0, single buffered']
    #allocation3 [shape = 's32[1]{0}', space=sflag, size = 0x4, scoped, tag = 'scoped memory for tpu_custom_call.1']
    #allocation4 [shape = 's32[1]{0}', space=sflag, size = 0x4, scoped, tag = 'scoped memory for tpu_custom_call.1']
    #allocation5 [shape = 'u8[4096]{0}', space=vmem, size = 0x1000, scoped, tag = 'output window, operand 0, single buffered']
    %6 = vsyncpa [#allocation3], 0
    %7 = vsyncpa [#allocation4], 0
    // Predicated region
    $region2: #{tpu_custom_call.1} parent=1 // pred_check
      _
    $region3: #{tpu_custom_call.1} parent=1 // pred_check_branch
      %9 = sbr.rel (0) target = $region5
    $region4: #{tpu_custom_call.1} parent=1 // pred_region
      %11 = vsyncadd [#allocation3], 0
      %s12 = sshll.u32 %s0, 4
      %s13 = int_to_ptr.hbm [resolvable:$true] %s12
      %s14 = sshll.u32 [#allocation2], 4
      %s15 = int_to_ptr.vmem [resolvable:$true] %s14
      %20 = dma.hbm_to_vmem [thread:$0]  %s13, 1024, %s15, [#allocation3], 128, 128, 8
    $region5: #{tpu_custom_call.1} parent=1 // pred_fallthru
      _
    // Predicated region
    $region6: #{tpu_custom_call.1} parent=1 // pred_check
      _
    $region7: #{tpu_custom_call.1} parent=1 // pred_check_branch
      %22 = sbr.rel (0) target = $region9
    $region8: #{tpu_custom_call.1} parent=1 // pred_region
      %24 = dma.done [#allocation3], 1024
    $region9: #{tpu_custom_call.1} parent=1 // pred_fallthru
      _
    %v25 = vld [vmem:[#allocation2] sm:$0x1]
    %v26 = vld [vmem:[#allocation2 + $0x8] sm:$0x1]
    %v27 = vld [vmem:[#allocation2 + $0x10] sm:$0x1]
    %v28 = vld [vmem:[#allocation2 + $0x18] sm:$0x1]
    %v29 = vld [vmem:[#allocation2 + $0x20] sm:$0x1]
    %v30 = vld [vmem:[#allocation2 + $0x28] sm:$0x1]
    %v31 = vld [vmem:[#allocation2 + $0x30] sm:$0x1]
    %v32 = vld [vmem:[#allocation2 + $0x38] sm:$0x1]
    %vm33 = vcmask 253952
    %34 = vst.msk [vmem:[#allocation5] sm:$0x1] %vm33, %v25
    %35 = vst.msk [vmem:[#allocation5 + $0x1] sm:$0x1] %vm33, %v26
    %36 = vst.msk [vmem:[#allocation5 + $0x2] sm:$0x1] %vm33, %v27
    %37 = vst.msk [vmem:[#allocation5 + $0x3] sm:$0x1] %vm33, %v28
    %38 = vst.msk [vmem:[#allocation5 + $0x4] sm:$0x1] %vm33, %v29
    %39 = vst.msk [vmem:[#allocation5 + $0x5] sm:$0x1] %vm33, %v30
    %40 = vst.msk [vmem:[#allocation5 + $0x6] sm:$0x1] %vm33, %v31
    %41 = vst.msk [vmem:[#allocation5 + $0x7] sm:$0x1] %vm33, %v32
    // Predicated region
    $region10: #{tpu_custom_call.1} parent=1 // pred_check
      _
    $region11: #{tpu_custom_call.1} parent=1 // pred_check_branch
      %43 = sbr.rel (0) target = $region13
    $region12: #{tpu_custom_call.1} parent=1 // pred_region
      %45 = vsyncadd [#allocation4], 0
      %s46 = sshll.u32 [#allocation5], 4
      %s47 = int_to_ptr.vmem [resolvable:$true] %s46
      %s48 = sshll.u32 %s1, 4
      %s49 = int_to_ptr.hbm [resolvable:$true] %s48
      %54 = dma.vmem_to_hbm [thread:$0]  %s47, 128, %s49, [#allocation4], 16, 16, 1
    $region13: #{tpu_custom_call.1} parent=1 // pred_fallthru
      _
    // Predicated region
    $region14: #{tpu_custom_call.1} parent=1 // pred_check
      _
    $region15: #{tpu_custom_call.1} parent=1 // pred_check_branch
      %56 = sbr.rel (0) target = $region17
    $region16: #{tpu_custom_call.1} parent=1 // pred_region
      %58 = dma.done [#allocation4], 128
    $region17: #{tpu_custom_call.1} parent=1 // pred_fallthru
      _
    %59 = vsyncpa [#allocation3], 1
    %60 = vsyncpa [#allocation4], 1

</llo_original>
